<compile_context>
chip_gen: v6e
topology: v6e:2x2x1
jax: 0.10.0
libtpu: 0.0.40
codegen_flags: <defaults>
</compile_context>

<pallas_src>
import math

import jax
import jax.numpy as jnp
from jax.experimental import pallas as pl
from jax.experimental.pallas import tpu as pltpu


def _round_up(x, m):
    return ((x + m - 1) // m) * m


# ---------------------------------------------------------------------------
# Pallas kernel: one fused matmul  [tile_m, 3*patch_len] @ [3*patch_len, d_pad]
# ---------------------------------------------------------------------------
def _patch_embed_kernel(feat_ref, w_ref, o_ref):
    o_ref[...] = jnp.dot(
        feat_ref[...], w_ref[...], preferred_element_type=jnp.float32
    ).astype(o_ref.dtype)


# ---------------------------------------------------------------------------
# Wrapper: padding / unfold / neighbor-concat glue + pallas_call
# ---------------------------------------------------------------------------
def patch_embedding(x, conv_w, *, patch_len, stride, tile_m=512,
                    compute_dtype=jnp.float32):
    """
    x:       [B, n_vars, seq_len]       float32
    conv_w:  [d_model, patch_len, 3]    float32 (PyTorch Conv1d weight layout)
    returns: (out [B*n_vars, num_patches, d_model], n_vars)
    """
    B, n_vars, seq_len = x.shape
    d_model = conv_w.shape[0]
    assert conv_w.shape[1] == patch_len and conv_w.shape[2] == 3

    # 1) ReplicationPad1d((0, stride)): repeat last time step `stride` times.
    x_padded = jnp.concatenate(
        [x, jnp.repeat(x[:, :, -1:], stride, axis=-1)], axis=-1)

    # 2) unfold into patches -> [B*n_vars, num_patches, patch_len]
    num_patches = (seq_len + stride - patch_len) // stride + 1
    idx = jnp.arange(num_patches)[:, None] * stride + jnp.arange(patch_len)[None, :]
    patches = x_padded[:, :, idx].reshape(B * n_vars, num_patches, patch_len)

    # 3) circular k=3 conv as a single matmul over [prev | cur | next] features.
    p_prev = jnp.roll(patches, 1, axis=1)     # patch[p-1]  (circular)
    p_next = jnp.roll(patches, -1, axis=1)    # patch[p+1]  (circular)
    K = 3 * patch_len
    M = B * n_vars * num_patches
    feat = jnp.concatenate([p_prev, patches, p_next], axis=-1).reshape(M, K)
    feat = feat.astype(compute_dtype)

    # stacked conv taps: [W0; W1; W2] -> [3*patch_len, d_model]
    w_stack = jnp.concatenate(
        [conv_w[:, :, 0].T, conv_w[:, :, 1].T, conv_w[:, :, 2].T], axis=0
    ).astype(compute_dtype)

    # lane-dense output: pad d_model up to a multiple of 128
    d_pad = _round_up(d_model, 128)
    if d_pad != d_model:
        w_stack = jnp.pad(w_stack, ((0, 0), (0, d_pad - d_model)))

    # row tiling: big tiles, tail handled by zero padding (no divisibility assert)
    tile_eff = min(tile_m, _round_up(M, 8))
    m_pad = _round_up(M, tile_eff)
    if m_pad != M:
        feat = jnp.pad(feat, ((0, m_pad - M), (0, 0)))

    grid = (m_pad // tile_eff,)

    # explicit VMEM budget: double-buffered input/output tiles + resident weights
    in_itemsize = jnp.dtype(compute_dtype).itemsize
    vmem_est = (2 * tile_eff * (K * in_itemsize + d_pad * 4)
                + 2 * K * d_pad * in_itemsize
                + (1 << 20))
    vmem_limit = int(min(max(2 * vmem_est, 16 * 1024 * 1024), 48 * 1024 * 1024))

    out = pl.pallas_call(
        _patch_embed_kernel,
        out_shape=jax.ShapeDtypeStruct((m_pad, d_pad), jnp.float32),
        grid=grid,
        in_specs=[
            pl.BlockSpec((tile_eff, K), lambda i: (i, 0)),   # feature rows
            pl.BlockSpec((K, d_pad), lambda i: (0, 0)),      # stacked weights (resident)
        ],
        out_specs=pl.BlockSpec((tile_eff, d_pad), lambda i: (i, 0)),
        compiler_params=pltpu.CompilerParams(
            dimension_semantics=("parallel",),
            vmem_limit_bytes=vmem_limit,
        ),
    )(feat, w_stack)

    out = out[:M, :d_model].reshape(B * n_vars, num_patches, d_model)
    # Dropout is inference-mode identity here (see TODO at top).
    return out, n_vars


# ---------------------------------------------------------------------------
# Pure-JAX reference (explicit replication pad + unfold + circular conv1d)
# ---------------------------------------------------------------------------
def _reference(x, conv_w, patch_len, stride):
    B, V, seq_len = x.shape
    D = conv_w.shape[0]
    x_padded = jnp.concatenate(
        [x, jnp.repeat(x[:, :, -1:], stride, axis=-1)], axis=-1)
    P = (seq_len + stride - patch_len) // stride + 1
    idx = jnp.arange(P)[:, None] * stride + jnp.arange(patch_len)[None, :]
    patches = x_padded[:, :, idx].reshape(B * V, P, patch_len)

    # circular conv1d (kernel=3, pad=1, no bias) along the patch axis
    ppad = jnp.concatenate([patches[:, -1:], patches, patches[:, :1]], axis=1)
    out = jnp.zeros((B * V, P, D), jnp.float32)
    for k in range(3):
        out = out + jnp.einsum("npl,ld->npd", ppad[:, k:k + P], conv_w[:, :, k].T)
    return out


if __name__ == "__main__":
    B, N_VARS, SEQ_LEN = 2, 4, 16
    PATCH_LEN, STRIDE, D_MODEL = 8, 4, 32

    key = jax.random.PRNGKey(0)
    k_x, k_w = jax.random.split(key)

    x = jax.random.normal(k_x, (B, N_VARS, SEQ_LEN), dtype=jnp.float32)

    # Conv1d weight [d_model, patch_len, 3], kaiming_normal(fan_in, leaky_relu)
    fan_in = PATCH_LEN * 3
    gain = math.sqrt(2.0 / (1.0 + 0.01 ** 2))
    std = gain / math.sqrt(fan_in)
    conv_w = std * jax.random.normal(k_w, (D_MODEL, PATCH_LEN, 3), dtype=jnp.float32)

    out, n_vars = patch_embedding(x, conv_w, patch_len=PATCH_LEN, stride=STRIDE)
    out = jax.block_until_ready(out)

    num_patches = (SEQ_LEN + STRIDE - PATCH_LEN) // STRIDE + 1
    ref = _reference(x, conv_w, PATCH_LEN, STRIDE)

    assert n_vars == N_VARS
    assert out.shape == (B * N_VARS, num_patches, D_MODEL)
    assert jnp.allclose(out, ref, rtol=1e-5, atol=1e-5), "mismatch vs reference"

    print("KERNEL_OK")
</pallas_src>

<mosaic_0001>
module attributes {stable_mosaic.version = 11 : i64} {
  func.func @_patch_embed_kernel(%arg0: i32, %arg1: memref<32x24xf32, #tpu.memory_space<vmem>>, %arg2: memref<24x128xf32, #tpu.memory_space<vmem>>, %arg3: memref<32x128xf32, #tpu.memory_space<vmem>>) attributes {dimension_semantics = [#tpu.dimension_semantics<parallel>], iteration_bounds = array<i64: 1>, scalar_prefetch = 0 : i64, scratch_operands = 0 : i64, tpu.core_type = #tpu.core_type<tc>, window_params = [{transform_indices = @transform_0, window_bounds = array<i64: 32, 24>}, {pipeline_mode = #tpu.pipeline_mode<synchronous>, transform_indices = @transform_1, window_bounds = array<i64: 24, 128>}, {transform_indices = @transform_2, window_bounds = array<i64: 32, 128>}]} {
    %c0 = arith.constant 0 : index
    %c0_0 = arith.constant 0 : index
    %0 = vector.load %arg1[%c0, %c0_0] : memref<32x24xf32, #tpu.memory_space<vmem>>, vector<32x24xf32>
    %c0_1 = arith.constant 0 : index
    %c0_2 = arith.constant 0 : index
    %1 = vector.load %arg2[%c0_1, %c0_2] : memref<24x128xf32, #tpu.memory_space<vmem>>, vector<24x128xf32>
    %cst = arith.constant dense<0.000000e+00> : vector<32x128xf32>
    %2 = tpu.matmul %0, %1, %cst {dimension_numbers = #tpu.dot_dimension_numbers<[1], [0], [0], [1], [0, 0, 1, 1], [], []>} : vector<32x24xf32>, vector<24x128xf32>, vector<32x128xf32> -> vector<32x128xf32>
    %c0_3 = arith.constant 0 : index
    %c0_4 = arith.constant 0 : index
    %3 = vector.load %arg3[%c0_3, %c0_4] : memref<32x128xf32, #tpu.memory_space<vmem>>, vector<32x128xf32>
    tpu.vector_store %arg3[%c0_3, %c0_4], %2 {strides = array<i32>} : memref<32x128xf32, #tpu.memory_space<vmem>>, vector<32x128xf32>,
    return
  }
  func.func @transform_0(%arg0: i32) -> (i32, i32) {
    %c0_i32 = arith.constant 0 : i32
    %c0_i32_0 = arith.constant 0 : i32
    return %arg0, %c0_i32 : i32, i32
  }
  func.func @transform_1(%arg0: i32) -> (i32, i32) {
    %c0_i32 = arith.constant 0 : i32
    %c0_i32_0 = arith.constant 0 : i32
    %c0_i32_1 = arith.constant 0 : i32
    return %c0_i32, %c0_i32_0 : i32, i32
  }
  func.func @transform_2(%arg0: i32) -> (i32, i32) {
    %c0_i32 = arith.constant 0 : i32
    %c0_i32_0 = arith.constant 0 : i32
    return %arg0, %c0_i32 : i32, i32
  }
}

</mosaic_0001>

<llo_original>
// kernel: tpu_custom_call.1
$region0: #{tpu_custom_call.1}
  #allocation0 [shape = 'u32[]', space=smem, size = 0x4, offset = 0x4, fixed_abs, tag = 'smem constant byte address 0x4 - core index']
  #allocation1 [shape = 'u32[144,128]{1,0:T(1,128)}', space=vmem, size = 0x12000, scoped, tag = 'internal scratch']
  %s0 = inlined_call_operand.vmem [shape: f32[32,24], index: 0, kind: input, shape index: {}]
  %s1 = inlined_call_operand.vmem [shape: f32[24,128], index: 1, kind: input, shape index: {}]
  %s2 = inlined_call_operand.hbm [shape: f32[32,128], index: 2, kind: output, shape index: {}]
  %s3 = sld [smem:[#allocation0]]
  $region18: #{tpu_custom_call.1} parent=0
    _
  %s5 = ssub.s32 1, %s3
  %s6 = scalar_select 0, %s5, %s3
  $region1: #{tpu_custom_call.1} parent=0
    #allocation2 [shape = 'u8[16384]{0}', space=vmem, size = 0x4000, scoped, tag = 'output window, operand 0, single buffered']
    #allocation3 [shape = 's32[1]{0}', space=sflag, size = 0x4, scoped, tag = 'scoped memory for tpu_custom_call.1']
    %7 = vsyncpa [#allocation3], 0
    // Predicated region
    $region2: #{tpu_custom_call.1} parent=1 // pred_check
      _
    $region3: #{tpu_custom_call.1} parent=1 // pred_check_branch
      %9 = sbr.rel (0) target = $region5
    $region4: #{tpu_custom_call.1} parent=1 // pred_region
      _
    $region5: #{tpu_custom_call.1} parent=1 // pred_fallthru
      _
    // Predicated region
    $region6: #{tpu_custom_call.1} parent=1 // pred_check
      _
    $region7: #{tpu_custom_call.1} parent=1 // pred_check_branch
      %11 = sbr.rel (0) target = $region9
    $region8: #{tpu_custom_call.1} parent=1 // pred_region
      _
    $region9: #{tpu_custom_call.1} parent=1 // pred_fallthru
      _
    %v12 = vld [vmem:[%s0] sm:$0xff]
    %v13 = vld [vmem:[%s0 + $0x8] sm:$0xff]
    %v14 = vld [vmem:[%s0 + $0x10] sm:$0xff]
    %v15 = vld [vmem:[%s0 + $0x18] sm:$0xff]
    %v16 = vld [vmem:[%s1] sm:$0xff]
    %v17 = vld [vmem:[%s1 + $0x8] sm:$0xff]
    %v18 = vld [vmem:[%s1 + $0x10] sm:$0xff]
    %vm19 = vcmask 195584
    %v21 = vsel %vm19, %v12, 0
    %v24 = vsel %vm19, %v13, 0
    %v27 = vsel %vm19, %v14, 0
    %v30 = vsel %vm19, %v15, 0
    %32 = vmatprep.subr.mxu0 0.0
    %33 = vmatpush1.msra.mxu0 0.0
    %34 = vmatprep.subr.mxu0 0.0
    %35 = vmatpush1.msra.mxu0 0.0
    %36 = vmatprep.subr.mxu0 0.0
    %37 = vmatpush1.msra.mxu0 0.0
    %38 = vmatprep.subr.mxu0 0.0
    %39 = vmatpush1.msra.mxu0 0.0
    %40 = vmatprep.subr.mxu0 0.0
    %41 = vmatpush1.msra.mxu0 0.0
    %42 = vmatprep.subr.mxu0 0.0
    %43 = vmatpush1.msra.mxu0 0.0
    %44 = vmatprep.subr.mxu0 0.0
    %45 = vmatpush1.msra.mxu0 0.0
    %46 = vmatprep.subr.mxu0 0.0
    %47 = vmatpush1.msra.mxu0 0.0
    %48 = vmatprep.subr.mxu0 0.0
    %49 = vmatpush1.msra.mxu0 0.0
    %50 = vmatprep.subr.mxu0 0.0
    %51 = vmatpush1.msra.mxu0 0.0
    %52 = vmatprep.subr.mxu0 0.0
    %53 = vmatpush1.msra.mxu0 0.0
    %54 = vmatprep.subr.mxu0 0.0
    %55 = vmatpush1.msra.mxu0 0.0
    %56 = vmatprep.subr.mxu0 0.0
    %57 = vmatpush1.msra.mxu0 0.0
    %58 = vmatprep.subr.mxu0 0.0
    %59 = vmatpush1.msra.mxu0 %v18
    %60 = vmatprep.subr.mxu0 0.0
    %61 = vmatpush1.msra.mxu0 %v17
    %62 = vmatprep.subr.mxu0 0.0
    %63 = vmatpush1.msra.mxu0 %v16
    %64 = vmatprep.subr.mxu0 0.0
    %65 = vmatpush2.msra.mxu0 0.0
    %66 = vmatprep.subr.mxu0 0.0
    %67 = vmatpush2.msra.mxu0 0.0
    %68 = vmatprep.subr.mxu0 0.0
    %69 = vmatpush2.msra.mxu0 0.0
    %70 = vmatprep.subr.mxu0 0.0
    %71 = vmatpush2.msra.mxu0 0.0
    %72 = vmatprep.subr.mxu0 0.0
    %73 = vmatpush2.msra.mxu0 0.0
    %74 = vmatprep.subr.mxu0 0.0
    %75 = vmatpush2.msra.mxu0 0.0
    %76 = vmatprep.subr.mxu0 0.0
    %77 = vmatpush2.msra.mxu0 0.0
    %78 = vmatprep.subr.mxu0 0.0
    %79 = vmatpush2.msra.mxu0 0.0
    %80 = vmatprep.subr.mxu0 0.0
    %81 = vmatpush2.msra.mxu0 0.0
    %82 = vmatprep.subr.mxu0 0.0
    %83 = vmatpush2.msra.mxu0 0.0
    %84 = vmatprep.subr.mxu0 0.0
    %85 = vmatpush2.msra.mxu0 0.0
    %86 = vmatprep.subr.mxu0 0.0
    %87 = vmatpush2.msra.mxu0 0.0
    %88 = vmatprep.subr.mxu0 0.0
    %89 = vmatpush2.msra.mxu0 0.0
    %90 = vmatprep.subr.mxu0 0.0
    %91 = vmatpush2.msra.mxu0 0.0
    %92 = vmatprep.subr.mxu0 0.0
    %93 = vmatpush2.msra.mxu0 0.0
    %94 = vmatprep.subr.mxu0 0.0
    %95 = vmatpush2.msra.mxu0 0.0
    %96 = vmatprep.mubr.f32.mxu0 0.0
    %97 = vmatmul.mubr.f32.gmra.mxu0 %v21
    %v98 = vpop.f32.mrf.mxu0
    %v99 = vadd.f32 0.0, %v98
    %v100 = vpop.f32.mrf.mxu0
    %101 = vmatprep.mubr.f32.mxu0 0.0
    %102 = vmatmul.mubr.f32.gmra.mxu0 %v24
    %v103 = vpop.f32.mrf.mxu0
    %v104 = vadd.f32 0.0, %v103
    %v105 = vpop.f32.mrf.mxu0
    %106 = vmatprep.mubr.f32.mxu0 0.0
    %107 = vmatmul.mubr.f32.gmra.mxu0 %v27
    %v108 = vpop.f32.mrf.mxu0
    %v109 = vadd.f32 0.0, %v108
    %v110 = vpop.f32.mrf.mxu0
    %111 = vmatprep.mubr.f32.mxu0 0.0
    %112 = vmatmul.mubr.f32.gmra.mxu0 %v30
    %v113 = vpop.f32.mrf.mxu0
    %v114 = vadd.f32 0.0, %v113
    %v115 = vpop.f32.mrf.mxu0
    %116 = vdwg.mxu0
    %117 = vst [vmem:[#allocation2] sm:$0xff] %v99
    %118 = vst [vmem:[#allocation2 + $0x8] sm:$0xff] %v104
    %119 = vst [vmem:[#allocation2 + $0x10] sm:$0xff] %v109
    %120 = vst [vmem:[#allocation2 + $0x18] sm:$0xff] %v114
    // Predicated region
    $region10: #{tpu_custom_call.1} parent=1 // pred_check
      _
    $region11: #{tpu_custom_call.1} parent=1 // pred_check_branch
      %122 = sbr.rel (0) target = $region13
    $region12: #{tpu_custom_call.1} parent=1 // pred_region
      %s124 = ssub.s32 512, 512
      %125 = vsyncadd [#allocation3], %s124
      %s126 = sshll.u32 [#allocation2], 4
      %s127 = int_to_ptr.vmem [resolvable:$true] %s126
      %132 = dma.vmem_to_hbm [thread:$0]  %s127, 512, %s2, [#allocation3], 128, 128, 8
    $region13: #{tpu_custom_call.1} parent=1 // pred_fallthru
      _
    // Predicated region
    $region14: #{tpu_custom_call.1} parent=1 // pred_check
      _
    $region15: #{tpu_custom_call.1} parent=1 // pred_check_branch
      %134 = sbr.rel (0) target = $region17
    $region16: #{tpu_custom_call.1} parent=1 // pred_region
      %135 = dma.done [#allocation3], 512
    $region17: #{tpu_custom_call.1} parent=1 // pred_fallthru
      _
    %136 = vsyncpa [#allocation3], 1

</llo_original>
